<compile_context>
chip_gen: v6e
topology: v6e:2x2x1
jax: 0.10.0
libtpu: 0.0.40
codegen_flags: <defaults>
</compile_context>

<pallas_src>
import jax
import jax.numpy as jnp
from jax.experimental import pallas as pl
from jax.experimental.pallas import tpu as pltpu


def attention_kernel(t_ref, h_ref, w1_ref, w2_ref, bw_ref, awe_ref, alpha_ref):
    """One grid step == one block of BB batch rows.

    t_ref  : (BB, N, E)  tile encodings (f32 or bf16, cast at the boundary)
    h_ref  : (BB, D)     decoder hidden state (same dtype as tiles)
    w1_ref : (E, A)      tile_encoder_att weight, transposed (resident)
    w2_ref : (D, A)      decoder_att weight, transposed (resident)
    bw_ref : (2, A)      row 0 = b1 + b2, row 1 = full_att weight (b3 dropped:
                         a constant shift cancels in the softmax)
    """
    bb, n, e_dim = t_ref.shape
    a_dim = w1_ref.shape[1]

    t = t_ref[...]                                   # (BB, N, E) tile dtype
    h = h_ref[...]                                   # (BB, D)
    b12 = bw_ref[0:1, :]                             # (1, A) f32
    w3 = bw_ref[1:2, :]                              # (1, A) f32

    # --- Projections on the MXU, M = BB*N (batch-blocked), f32 accumulate ---
    t2d = t.reshape(bb * n, e_dim)
    att1 = jnp.dot(t2d, w1_ref[...],
                   preferred_element_type=jnp.float32).reshape(bb, n, a_dim)
    att2 = jnp.dot(h, w2_ref[...],
                   preferred_element_type=jnp.float32) + b12       # (BB, A)

    z = jnp.maximum(att1 + att2[:, None, :], 0.0)    # (BB, N, A) f32

    # --- Scores on VPU + lane reduce (avoids a width-1 MXU pass); lane-major.
    # TODO(synk): if the bundle dump shows the XLU slot saturating, move this
    # A-reduction back onto the (idle) MXU by padding w3 to (A, 128).
    scores = jnp.sum(z * w3[None, :, :], axis=-1)                   # (BB, N)

    # --- Softmax over the tile axis (lanes); EUP approx reciprocal ---
    m = jnp.max(scores, axis=-1, keepdims=True)
    ex = jnp.exp(scores - m)
    denom = jnp.sum(ex, axis=-1, keepdims=True)
    alpha = ex * pl.reciprocal(denom, approx=True)                  # (BB, N)

    # --- Attention-weighted encoding: f32 VPU multiply + reduce over N.
    # (Upcast keeps the elementwise path f32 -> valid on v5e's no-bf16 VPU.)
    t_f32 = t.astype(jnp.float32)
    awe = jnp.sum(t_f32 * alpha[:, :, None], axis=1)                # (BB, E)

    awe_ref[...] = awe.astype(awe_ref.dtype)
    alpha_ref[...] = alpha.astype(alpha_ref.dtype)


def _vmem_limit_bytes():
    """Generation-aware scoped-VMEM limit (v7x has 64 MiB vs 128 on v5e/v6e)."""
    try:
        physical = int(pltpu.get_tpu_info().vmem_capacity_bytes)
    except Exception:
        physical = 64 << 20          # conservative: v7x per-TC VMEM
    return int(min(physical * 3 // 4, 96 << 20))


def _choose_block_b(B, N, E, D, A, *, tile_bytes, vmem_budget_bytes,
                    target_rows=2048):
    """Largest batch block with M = BB*N ~ target_rows that fits the budget.

    The budget check runs AFTER rounding BB up to a multiple of 8 and accounts
    for: double-buffered tile/hidden blocks, single-buffered resident weights,
    the two f32 (BB, N, A) intermediates (att1, z), the f32 upcast of the tile
    block (when tiles arrive bf16) and the double-buffered outputs.
    """
    def vmem_usage(bb):
        tile_blk = 2 * bb * N * E * tile_bytes              # streamed tiles
        hid_blk = 2 * bb * D * tile_bytes                   # decoder hidden
        resident = (E * A + D * A) * tile_bytes + 2 * A * 4  # W1^T, W2^T, [b12;w3]
        inter = 2 * bb * N * A * 4                          # att1 + z (f32)
        if tile_bytes < 4:
            inter += bb * N * E * 4                         # f32 upcast of tiles
        outs = 2 * bb * (E + N) * 4                         # awe + alpha
        return tile_blk + hid_blk + resident + inter + outs

    bb = max(1, pl.cdiv(target_rows, N))
    if bb < B:
        bb = max(8, ((bb + 7) // 8) * 8)                    # sublane-friendly
    bb = min(bb, B)
    if B >= 16:
        # Keep >= 2 grid steps so the "parallel" batch axis can shard across
        # v7x's two TensorCores.
        bb = min(bb, max(8, (B // 2) // 8 * 8))
    while bb > 1 and vmem_usage(bb) > vmem_budget_bytes:
        bb = ((bb // 2 + 7) // 8) * 8 if bb > 8 else bb // 2
    return max(bb, 1)


def attention_forward(tile_out, decoder_hidden, params, *,
                      block_b=None, mxu_dtype=jnp.bfloat16):
    """tile_out: (B, N, E), decoder_hidden: (B, D) -> ((B, E), (B, N)).

    mxu_dtype=bf16 (default) casts the streamed tiles / hidden / weights at the
    pallas_call boundary, halving the dominant HBM traffic; pass None for a
    bit-faithful f32 path.
    """
    B, N, E = tile_out.shape
    D = decoder_hidden.shape[1]
    w1t, b1, w2t, b2, w3, b3 = params        # b3 unused: cancels in the softmax
    A = w1t.shape[1]

    compute_in = jnp.dtype(mxu_dtype) if mxu_dtype is not None else jnp.dtype(jnp.float32)

    # bf16 at the boundary: the DMA moves half the bytes (items 4-6 of review).
    tiles = tile_out.astype(compute_in)
    hidden = decoder_hidden.astype(compute_in)
    w1k = w1t.astype(compute_in)
    w2k = w2t.astype(compute_in)

    # Fold the two attention biases into one row, pack with the w3 row.
    b12w3 = jnp.concatenate(
        [(b1 + b2).reshape(1, A), w3.reshape(1, A)], axis=0).astype(jnp.float32)

    vmem_limit = _vmem_limit_bytes()
    if block_b is None:
        block_b = _choose_block_b(
            B, N, E, D, A,
            tile_bytes=compute_in.itemsize,
            vmem_budget_bytes=int(vmem_limit * 0.8))

    B_pad = pl.cdiv(B, block_b) * block_b
    if B_pad != B:
        tiles = jnp.pad(tiles, ((0, B_pad - B), (0, 0), (0, 0)))
        hidden = jnp.pad(hidden, ((0, B_pad - B), (0, 0)))

    def run(single_buffer_residents):
        resident_kw = ({"pipeline_mode": pl.Buffered(1)}
                       if single_buffer_residents else {})
        grid_spec = pltpu.PrefetchScalarGridSpec(
            num_scalar_prefetch=0,
            grid=(B_pad // block_b,),
            in_specs=[
                pl.BlockSpec((block_b, N, E), lambda i: (i, 0, 0)),   # tiles
                pl.BlockSpec((block_b, D), lambda i: (i, 0)),         # hidden
                pl.BlockSpec((E, A), lambda i: (0, 0), **resident_kw),  # W1^T
                pl.BlockSpec((D, A), lambda i: (0, 0), **resident_kw),  # W2^T
                pl.BlockSpec((2, A), lambda i: (0, 0), **resident_kw),  # [b12; w3]
            ],
            out_specs=[
                pl.BlockSpec((block_b, E), lambda i: (i, 0)),   # awe (lane-dense)
                pl.BlockSpec((block_b, N), lambda i: (i, 0)),   # alpha (lane-dense)
            ],
        )
        out = pl.pallas_call(
            attention_kernel,
            out_shape=(
                jax.ShapeDtypeStruct((B_pad, E), jnp.float32),
                jax.ShapeDtypeStruct((B_pad, N), jnp.float32),
            ),
            grid_spec=grid_spec,
            compiler_params=pltpu.CompilerParams(
                dimension_semantics=("parallel",),
                vmem_limit_bytes=vmem_limit),
        )(tiles, hidden, w1k, w2k, b12w3)
        return jax.block_until_ready(out)

    try:
        awe, alpha = run(True)
    except Exception:
        # Fallback if this JAX build rejects single-buffered resident operands.
        awe, alpha = run(False)

    if B_pad != B:
        awe, alpha = awe[:B], alpha[:B]
    return awe, alpha


def reference_forward(tile_out, decoder_hidden, params):
    w1t, b1, w2t, b2, w3, b3 = params
    att1 = tile_out @ w1t + b1                     # (B, N, A)
    att2 = decoder_hidden @ w2t + b2               # (B, A)
    z = jnp.maximum(att1 + att2[:, None, :], 0.0)  # (B, N, A)
    att = (z @ w3 + b3)[..., 0]                    # (B, N)
    alpha = jax.nn.softmax(att, axis=1)
    awe = (tile_out * alpha[:, :, None]).sum(axis=1)
    return awe, alpha


if __name__ == "__main__":
    # Small deterministic shapes consistent with the module's forward:
    B, N = 2, 8                      # batch, number of tiles
    tile_encoder_dim = 32
    decoder_dim = 32
    attention_dim = 32

    key = jax.random.PRNGKey(0)
    k = jax.random.split(key, 8)

    tile_out = jax.random.normal(k[0], (B, N, tile_encoder_dim), jnp.float32)
    decoder_hidden = jax.random.normal(k[1], (B, decoder_dim), jnp.float32)

    # Deterministic parameter init (torch nn.Linear shapes, stored transposed).
    w1t = 0.1 * jax.random.normal(k[2], (tile_encoder_dim, attention_dim), jnp.float32)
    b1 = 0.1 * jax.random.normal(k[3], (attention_dim,), jnp.float32)
    w2t = 0.1 * jax.random.normal(k[4], (decoder_dim, attention_dim), jnp.float32)
    b2 = 0.1 * jax.random.normal(k[5], (attention_dim,), jnp.float32)
    w3 = 0.1 * jax.random.normal(k[6], (attention_dim, 1), jnp.float32)
    b3 = 0.1 * jax.random.normal(k[7], (1,), jnp.float32)
    params = (w1t, b1, w2t, b2, w3, b3)

    awe_ref, alpha_ref = reference_forward(tile_out, decoder_hidden, params)

    # f32 path: bit-faithful to the PyTorch module (tolerance only covers the
    # EUP approximate reciprocal in the softmax).
    awe32, alpha32 = attention_forward(tile_out, decoder_hidden, params,
                                       mxu_dtype=None)
    jax.block_until_ready((awe32, alpha32))
    assert awe32.shape == (B, tile_encoder_dim)
    assert alpha32.shape == (B, N)
    assert jnp.allclose(awe32, awe_ref, atol=2e-3, rtol=2e-3)
    assert jnp.allclose(alpha32, alpha_ref, atol=2e-3, rtol=2e-3)

    # Default perf path: bf16-at-the-boundary (half the HBM traffic); alpha
    # rows sum to ~1 (approx reciprocal) and values carry bf16-level error.
    awe_bf, alpha_bf = attention_forward(tile_out, decoder_hidden, params)
    jax.block_until_ready((awe_bf, alpha_bf))
    assert jnp.allclose(awe_bf, awe_ref, atol=2e-2, rtol=2e-2)
    assert jnp.allclose(alpha_bf, alpha_ref, atol=2e-2, rtol=2e-2)

    print("KERNEL_OK")
</pallas_src>

<mosaic_0001>
module attributes {stable_mosaic.version = 11 : i64} {
  func.func @attention_kernel(%arg0: i32, %arg1: memref<2x8x32xf32, #tpu.memory_space<vmem>>, %arg2: memref<2x32xf32, #tpu.memory_space<vmem>>, %arg3: memref<32x32xf32, #tpu.memory_space<vmem>>, %arg4: memref<32x32xf32, #tpu.memory_space<vmem>>, %arg5: memref<2x32xf32, #tpu.memory_space<vmem>>, %arg6: memref<2x32xf32, #tpu.memory_space<vmem>>, %arg7: memref<2x8xf32, #tpu.memory_space<vmem>>) attributes {dimension_semantics = [#tpu.dimension_semantics<parallel>], iteration_bounds = array<i64: 1>, scalar_prefetch = 0 : i64, scratch_operands = 0 : i64, tpu.core_type = #tpu.core_type<tc>, window_params = [{transform_indices = @transform_0, window_bounds = array<i64: 2, 8, 32>}, {transform_indices = @transform_1, window_bounds = array<i64: 2, 32>}, {pipeline_mode = #tpu.pipeline_mode<synchronous>, transform_indices = @transform_2, window_bounds = array<i64: 32, 32>}, {pipeline_mode = #tpu.pipeline_mode<synchronous>, transform_indices = @transform_3, window_bounds = array<i64: 32, 32>}, {pipeline_mode = #tpu.pipeline_mode<synchronous>, transform_indices = @transform_4, window_bounds = array<i64: 2, 32>}, {transform_indices = @transform_5, window_bounds = array<i64: 2, 32>}, {transform_indices = @transform_6, window_bounds = array<i64: 2, 8>}]} {
    %c0 = arith.constant 0 : index
    %c0_0 = arith.constant 0 : index
    %c0_1 = arith.constant 0 : index
    %0 = vector.load %arg1[%c0, %c0_0, %c0_1] : memref<2x8x32xf32, #tpu.memory_space<vmem>>, vector<2x8x32xf32>
    %c0_2 = arith.constant 0 : index
    %c0_3 = arith.constant 0 : index
    %1 = vector.load %arg2[%c0_2, %c0_3] : memref<2x32xf32, #tpu.memory_space<vmem>>, vector<2x32xf32>
    %c0_4 = arith.constant 0 : index
    %c0_5 = arith.constant 0 : index
    %2 = vector.load %arg5[%c0_4, %c0_5] : memref<2x32xf32, #tpu.memory_space<vmem>>, vector<1x32xf32>
    %c1 = arith.constant 1 : index
    %c0_6 = arith.constant 0 : index
    %3 = vector.load %arg5[%c1, %c0_6] : memref<2x32xf32, #tpu.memory_space<vmem>>, vector<1x32xf32>
    %4 = vector.shape_cast %0 : vector<2x8x32xf32> to vector<16x32xf32>
    %c0_7 = arith.constant 0 : index
    %c0_8 = arith.constant 0 : index
    %5 = vector.load %arg3[%c0_7, %c0_8] : memref<32x32xf32, #tpu.memory_space<vmem>>, vector<32x32xf32>
    %cst = arith.constant dense<0.000000e+00> : vector<16x32xf32>
    %6 = tpu.matmul %4, %5, %cst {dimension_numbers = #tpu.dot_dimension_numbers<[1], [0], [0], [1], [0, 0, 1, 1], [], []>} : vector<16x32xf32>, vector<32x32xf32>, vector<16x32xf32> -> vector<16x32xf32>
    %7 = vector.shape_cast %6 : vector<16x32xf32> to vector<2x8x32xf32>
    %c0_9 = arith.constant 0 : index
    %c0_10 = arith.constant 0 : index
    %8 = vector.load %arg4[%c0_9, %c0_10] : memref<32x32xf32, #tpu.memory_space<vmem>>, vector<32x32xf32>
    %cst_11 = arith.constant dense<0.000000e+00> : vector<2x32xf32>
    %9 = tpu.matmul %1, %8, %cst_11 {dimension_numbers = #tpu.dot_dimension_numbers<[1], [0], [0], [1], [0, 0, 1, 1], [], []>} : vector<2x32xf32>, vector<32x32xf32>, vector<2x32xf32> -> vector<2x32xf32>
    %10 = vector.broadcast %2 : vector<1x32xf32> to vector<2x32xf32>
    %11 = arith.addf %9, %10 : vector<2x32xf32>
    %12 = vector.shape_cast %11 : vector<2x32xf32> to vector<2x1x32xf32>
    %13 = vector.broadcast %12 : vector<2x1x32xf32> to vector<2x8x32xf32>
    %14 = arith.addf %7, %13 : vector<2x8x32xf32>
    %cst_12 = arith.constant 0.000000e+00 : f32
    %15 = vector.broadcast %cst_12 : f32 to vector<2x8x32xf32>
    %16 = arith.maximumf %14, %15 : vector<2x8x32xf32>
    %17 = vector.shape_cast %3 : vector<1x32xf32> to vector<1x1x32xf32>
    %18 = vector.broadcast %17 : vector<1x1x32xf32> to vector<2x8x32xf32>
    %19 = arith.mulf %16, %18 : vector<2x8x32xf32>
    %cst_13 = arith.constant dense<0.000000e+00> : vector<2x8xf32>
    %20 = vector.multi_reduction <add>, %19, %cst_13 [2] : vector<2x8x32xf32> to vector<2x8xf32>
    %cst_14 = arith.constant dense<0xFF800000> : vector<2xf32>
    %21 = vector.multi_reduction <maximumf>, %20, %cst_14 [1] : vector<2x8xf32> to vector<2xf32>
    %22 = vector.shape_cast %21 : vector<2xf32> to vector<2x1xf32>
    %23 = vector.broadcast %22 : vector<2x1xf32> to vector<2x8xf32>
    %24 = arith.subf %20, %23 : vector<2x8xf32>
    %25 = math.exp %24 : vector<2x8xf32>
    %cst_15 = arith.constant dense<0.000000e+00> : vector<2xf32>
    %26 = vector.multi_reduction <add>, %25, %cst_15 [1] : vector<2x8xf32> to vector<2xf32>
    %27 = vector.shape_cast %26 : vector<2xf32> to vector<2x1xf32>
    %28 = tpu.reciprocal %27 {approx = true} : vector<2x1xf32> -> vector<2x1xf32>
    %29 = vector.broadcast %28 : vector<2x1xf32> to vector<2x8xf32>
    %30 = arith.mulf %25, %29 : vector<2x8xf32>
    %31 = vector.shape_cast %30 : vector<2x8xf32> to vector<2x8x1xf32>
    %32 = vector.broadcast %31 : vector<2x8x1xf32> to vector<2x8x32xf32>
    %33 = arith.mulf %0, %32 : vector<2x8x32xf32>
    %cst_16 = arith.constant dense<0.000000e+00> : vector<2x32xf32>
    %34 = vector.multi_reduction <add>, %33, %cst_16 [1] : vector<2x8x32xf32> to vector<2x32xf32>
    %c0_17 = arith.constant 0 : index
    %c0_18 = arith.constant 0 : index
    %35 = vector.load %arg6[%c0_17, %c0_18] : memref<2x32xf32, #tpu.memory_space<vmem>>, vector<2x32xf32>
    tpu.vector_store %arg6[%c0_17, %c0_18], %34 {strides = array<i32>} : memref<2x32xf32, #tpu.memory_space<vmem>>, vector<2x32xf32>,
    %c0_19 = arith.constant 0 : index
    %c0_20 = arith.constant 0 : index
    %36 = vector.load %arg7[%c0_19, %c0_20] : memref<2x8xf32, #tpu.memory_space<vmem>>, vector<2x8xf32>
    tpu.vector_store %arg7[%c0_19, %c0_20], %30 {strides = array<i32>} : memref<2x8xf32, #tpu.memory_space<vmem>>, vector<2x8xf32>,
    return
  }
  func.func @transform_0(%arg0: i32) -> (i32, i32, i32) {
    %c0_i32 = arith.constant 0 : i32
    %c0_i32_0 = arith.constant 0 : i32
    %c0_i32_1 = arith.constant 0 : i32
    return %arg0, %c0_i32, %c0_i32_0 : i32, i32, i32
  }
  func.func @transform_1(%arg0: i32) -> (i32, i32) {
    %c0_i32 = arith.constant 0 : i32
    %c0_i32_0 = arith.constant 0 : i32
    return %arg0, %c0_i32 : i32, i32
  }
  func.func @transform_2(%arg0: i32) -> (i32, i32) {
    %c0_i32 = arith.constant 0 : i32
    %c0_i32_0 = arith.constant 0 : i32
    %c0_i32_1 = arith.constant 0 : i32
    return %c0_i32, %c0_i32_0 : i32, i32
  }
  func.func @transform_3(%arg0: i32) -> (i32, i32) {
    %c0_i32 = arith.constant 0 : i32
    %c0_i32_0 = arith.constant 0 : i32
    %c0_i32_1 = arith.constant 0 : i32
    return %c0_i32, %c0_i32_0 : i32, i32
  }
  func.func @transform_4(%arg0: i32) -> (i32, i32) {
    %c0_i32 = arith.constant 0 : i32
    %c0_i32_0 = arith.constant 0 : i32
    %c0_i32_1 = arith.constant 0 : i32
    return %c0_i32, %c0_i32_0 : i32, i32
  }
  func.func @transform_5(%arg0: i32) -> (i32, i32) {
    %c0_i32 = arith.constant 0 : i32
    %c0_i32_0 = arith.constant 0 : i32
    return %arg0, %c0_i32 : i32, i32
  }
  func.func @transform_6(%arg0: i32) -> (i32, i32) {
    %c0_i32 = arith.constant 0 : i32
    %c0_i32_0 = arith.constant 0 : i32
    return %arg0, %c0_i32 : i32, i32
  }
}

module attributes {stable_mosaic.version = 11 : i64} {
  func.func @attention_kernel(%arg0: i32, %arg1: memref<2x8x32xf32, #tpu.memory_space<vmem>>, %arg2: memref<2x32xf32, #tpu.memory_space<vmem>>, %arg3: memref<32x32xf32, #tpu.memory_space<vmem>>, %arg4: memref<32x32xf32, #tpu.memory_space<vmem>>, %arg5: memref<2x32xf32, #tpu.memory_space<vmem>>, %arg6: memref<2x32xf32, #tpu.memory_space<vmem>>, %arg7: memref<2x8xf32, #tpu.memory_space<vmem>>) attributes {dimension_semantics = [#tpu.dimension_semantics<parallel>], iteration_bounds = array<i64: 1>, scalar_prefetch = 0 : i64, scratch_operands = 0 : i64, tpu.core_type = #tpu.core_type<tc>, window_params = [{transform_indices = @transform_0, window_bounds = array<i64: 2, 8, 32>}, {transform_indices = @transform_1, window_bounds = array<i64: 2, 32>}, {pipeline_mode = #tpu.pipeline_mode<synchronous>, transform_indices = @transform_2, window_bounds = array<i64: 32, 32>}, {pipeline_mode = #tpu.pipeline_mode<synchronous>, transform_indices = @transform_3, window_bounds = array<i64: 32, 32>}, {pipeline_mode = #tpu.pipeline_mode<synchronous>, transform_indices = @transform_4, window_bounds = array<i64: 2, 32>}, {transform_indices = @transform_5, window_bounds = array<i64: 2, 32>}, {transform_indices = @transform_6, window_bounds = array<i64: 2, 8>}]} {
    %c0 = arith.constant 0 : index
    %c0_0 = arith.constant 0 : index
    %c0_1 = arith.constant 0 : index
    %0 = vector.load %arg1[%c0, %c0_0, %c0_1] : memref<2x8x32xf32, #tpu.memory_space<vmem>>, vector<2x8x32xf32>
    %c0_2 = arith.constant 0 : index
    %c0_3 = arith.constant 0 : index
    %1 = vector.load %arg2[%c0_2, %c0_3] : memref<2x32xf32, #tpu.memory_space<vmem>>, vector<2x32xf32>
    %c0_4 = arith.constant 0 : index
    %c0_5 = arith.constant 0 : index
    %2 = vector.load %arg5[%c0_4, %c0_5] : memref<2x32xf32, #tpu.memory_space<vmem>>, vector<1x32xf32>
    %c1 = arith.constant 1 : index
    %c0_6 = arith.constant 0 : index
    %3 = vector.load %arg5[%c1, %c0_6] : memref<2x32xf32, #tpu.memory_space<vmem>>, vector<1x32xf32>
    %4 = vector.shape_cast %0 : vector<2x8x32xf32> to vector<16x32xf32>
    %c0_7 = arith.constant 0 : index
    %c0_8 = arith.constant 0 : index
    %5 = vector.load %arg3[%c0_7, %c0_8] : memref<32x32xf32, #tpu.memory_space<vmem>>, vector<32x32xf32>
    %cst = arith.constant dense<0.000000e+00> : vector<16x32xf32>
    %6 = tpu.matmul %4, %5, %cst {dimension_numbers = #tpu.dot_dimension_numbers<[1], [0], [0], [1], [0, 0, 1, 1], [], []>} : vector<16x32xf32>, vector<32x32xf32>, vector<16x32xf32> -> vector<16x32xf32>
    %7 = vector.shape_cast %6 : vector<16x32xf32> to vector<2x8x32xf32>
    %c0_9 = arith.constant 0 : index
    %c0_10 = arith.constant 0 : index
    %8 = vector.load %arg4[%c0_9, %c0_10] : memref<32x32xf32, #tpu.memory_space<vmem>>, vector<32x32xf32>
    %cst_11 = arith.constant dense<0.000000e+00> : vector<2x32xf32>
    %9 = tpu.matmul %1, %8, %cst_11 {dimension_numbers = #tpu.dot_dimension_numbers<[1], [0], [0], [1], [0, 0, 1, 1], [], []>} : vector<2x32xf32>, vector<32x32xf32>, vector<2x32xf32> -> vector<2x32xf32>
    %10 = vector.broadcast %2 : vector<1x32xf32> to vector<2x32xf32>
    %11 = arith.addf %9, %10 : vector<2x32xf32>
    %12 = vector.shape_cast %11 : vector<2x32xf32> to vector<2x1x32xf32>
    %13 = vector.broadcast %12 : vector<2x1x32xf32> to vector<2x8x32xf32>
    %14 = arith.addf %7, %13 : vector<2x8x32xf32>
    %cst_12 = arith.constant 0.000000e+00 : f32
    %15 = vector.broadcast %cst_12 : f32 to vector<2x8x32xf32>
    %16 = arith.maximumf %14, %15 : vector<2x8x32xf32>
    %17 = vector.shape_cast %3 : vector<1x32xf32> to vector<1x1x32xf32>
    %18 = vector.broadcast %17 : vector<1x1x32xf32> to vector<2x8x32xf32>
    %19 = arith.mulf %16, %18 : vector<2x8x32xf32>
    %cst_13 = arith.constant dense<0.000000e+00> : vector<2x8xf32>
    %20 = vector.multi_reduction <add>, %19, %cst_13 [2] : vector<2x8x32xf32> to vector<2x8xf32>
    %cst_14 = arith.constant dense<0xFF800000> : vector<2xf32>
    %21 = vector.multi_reduction <maximumf>, %20, %cst_14 [1] : vector<2x8xf32> to vector<2xf32>
    %22 = vector.shape_cast %21 : vector<2xf32> to vector<2x1xf32>
    %23 = vector.broadcast %22 : vector<2x1xf32> to vector<2x8xf32>
    %24 = arith.subf %20, %23 : vector<2x8xf32>
    %25 = math.exp %24 : vector<2x8xf32>
    %cst_15 = arith.constant dense<0.000000e+00> : vector<2xf32>
    %26 = vector.multi_reduction <add>, %25, %cst_15 [1] : vector<2x8xf32> to vector<2xf32>
    %27 = vector.shape_cast %26 : vector<2xf32> to vector<2x1xf32>
    %28 = tpu.reciprocal %27 {approx = true} : vector<2x1xf32> -> vector<2x1xf32>
    %29 = vector.broadcast %28 : vector<2x1xf32> to vector<2x8xf32>
    %30 = arith.mulf %25, %29 : vector<2x8xf32>
    %31 = vector.shape_cast %30 : vector<2x8xf32> to vector<2x8x1xf32>
    %32 = vector.broadcast %31 : vector<2x8x1xf32> to vector<2x8x32xf32>
    %33 = arith.mulf %0, %32 : vector<2x8x32xf32>
    %cst_16 = arith.constant dense<0.000000e+00> : vector<2x32xf32>
    %34 = vector.multi_reduction <add>, %33, %cst_16 [1] : vector<2x8x32xf32> to vector<2x32xf32>
    %c0_17 = arith.constant 0 : index
    %c0_18 = arith.constant 0 : index
    %35 = vector.load %arg6[%c0_17, %c0_18] : memref<2x32xf32, #tpu.memory_space<vmem>>, vector<2x32xf32>
    tpu.vector_store %arg6[%c0_17, %c0_18], %34 {strides = array<i32>} : memref<2x32xf32, #tpu.memory_space<vmem>>, vector<2x32xf32>,
    %c0_19 = arith.constant 0 : index
    %c0_20 = arith.constant 0 : index
    %36 = vector.load %arg7[%c0_19, %c0_20] : memref<2x8xf32, #tpu.memory_space<vmem>>, vector<2x8xf32>
    tpu.vector_store %arg7[%c0_19, %c0_20], %30 {strides = array<i32>} : memref<2x8xf32, #tpu.memory_space<vmem>>, vector<2x8xf32>,
    return
  }
  func.func @transform_0(%arg0: i32) -> (i32, i32, i32) {
    %c0_i32 = arith.constant 0 : i32
    %c0_i32_0 = arith.constant 0 : i32
    %c0_i32_1 = arith.constant 0 : i32
    return %arg0, %c0_i32, %c0_i32_0 : i32, i32, i32
  }
  func.func @transform_1(%arg0: i32) -> (i32, i32) {
    %c0_i32 = arith.constant 0 : i32
    %c0_i32_0 = arith.constant 0 : i32
    return %arg0, %c0_i32 : i32, i32
  }
  func.func @transform_2(%arg0: i32) -> (i32, i32) {
    %c0_i32 = arith.constant 0 : i32
    %c0_i32_0 = arith.constant 0 : i32
    %c0_i32_1 = arith.constant 0 : i32
    return %c0_i32, %c0_i32_0 : i32, i32
  }
  func.func @transform_3(%arg0: i32) -> (i32, i32) {
    %c0_i32 = arith.constant 0 : i32
    %c0_i32_0 = arith.constant 0 : i32
    %c0_i32_1 = arith.constant 0 : i32
    return %c0_i32, %c0_i32_0 : i32, i32
  }
  func.func @transform_4(%arg0: i32) -> (i32, i32) {
    %c0_i32 = arith.constant 0 : i32
    %c0_i32_0 = arith.constant 0 : i32
    %c0_i32_1 = arith.constant 0 : i32
    return %c0_i32, %c0_i32_0 : i32, i32
  }
  func.func @transform_5(%arg0: i32) -> (i32, i32) {
    %c0_i32 = arith.constant 0 : i32
    %c0_i32_0 = arith.constant 0 : i32
    return %arg0, %c0_i32 : i32, i32
  }
  func.func @transform_6(%arg0: i32) -> (i32, i32) {
    %c0_i32 = arith.constant 0 : i32
    %c0_i32_0 = arith.constant 0 : i32
    return %arg0, %c0_i32 : i32, i32
  }
}

</mosaic_0001>

<llo_original>
// kernel: tpu_custom_call.1
$region0: #{tpu_custom_call.1}
  #allocation0 [shape = 'u32[]', space=smem, size = 0x4, offset = 0x4, fixed_abs, tag = 'smem constant byte address 0x4 - core index']
  #allocation1 [shape = 'u32[144,128]{1,0:T(1,128)}', space=vmem, size = 0x12000, scoped, tag = 'internal scratch']
  %s0 = inlined_call_operand.hbm [shape: f32[2,8,32], index: 0, kind: input, shape index: {}]
  %s1 = inlined_call_operand.hbm [shape: f32[2,32], index: 1, kind: input, shape index: {}]
  %s2 = inlined_call_operand.hbm [shape: f32[32,32], index: 2, kind: input, shape index: {}]
  %s3 = inlined_call_operand.hbm [shape: f32[32,32], index: 3, kind: input, shape index: {}]
  %s4 = inlined_call_operand.vmem [shape: f32[2,32], index: 4, kind: input, shape index: {}]
  %s5 = inlined_call_operand.hbm [shape: f32[2,32], index: 5, kind: output, shape index: {0}]
  %s6 = inlined_call_operand.hbm [shape: f32[2,8], index: 6, kind: output, shape index: {1}]
  %7 = xla_tuple %s5, %s6
  %s8 = sld [smem:[#allocation0]]
  $region54: #{tpu_custom_call.1} parent=0
    _
  %s10 = ssub.s32 1, %s8
  %s11 = scalar_select 0, %s10, %s8
  $region1: #{tpu_custom_call.1} parent=0
    #allocation2 [shape = 'u8[8192]{0}', space=vmem, size = 0x2000, scoped, tag = 'input window, operand 0, single buffered']
    #allocation3 [shape = 's32[1]{0}', space=sflag, size = 0x4, scoped, tag = 'scoped memory for tpu_custom_call.1']
    #allocation4 [shape = 's32[1]{0}', space=sflag, size = 0x4, scoped, tag = 'scoped memory for tpu_custom_call.1']
    #allocation5 [shape = 'u8[1024]{0}', space=vmem, size = 0x400, scoped, tag = 'input window, operand 1, single buffered']
    #allocation6 [shape = 's32[1]{0}', space=sflag, size = 0x4, scoped, tag = 'scoped memory for tpu_custom_call.1']
    #allocation7 [shape = 'u8[16384]{0}', space=vmem, size = 0x4000, scoped, tag = 'input window, operand 2, single buffered']
    #allocation8 [shape = 'u8[16384]{0}', space=vmem, size = 0x4000, scoped, tag = 'input window, operand 3, single buffered']
    #allocation9 [shape = 's32[1]{0}', space=sflag, size = 0x4, scoped, tag = 'scoped memory for tpu_custom_call.1']
    #allocation10 [shape = 'u8[1024]{0}', space=vmem, size = 0x400, scoped, tag = 'output window, operand 0, single buffered']
    #allocation11 [shape = 'u8[1024]{0}', space=vmem, size = 0x400, scoped, tag = 'output window, operand 1, single buffered']
    #allocation12 [shape = 's32[1]{0}', space=sflag, size = 0x4, scoped, tag = 'scoped memory for tpu_custom_call.1']
    %12 = vsyncpa [#allocation3], 0
    %13 = vsyncpa [#allocation6], 0
    %14 = vsyncpa [#allocation9], 0
    %15 = vsyncpa [#allocation4], 0
    %16 = vsyncpa [#allocation12], 0
    // Predicated region
    $region2: #{tpu_custom_call.1} parent=1 // pred_check
      _
    $region3: #{tpu_custom_call.1} parent=1 // pred_check_branch
      %18 = sbr.rel (0) target = $region5
    $region4: #{tpu_custom_call.1} parent=1 // pred_region
      %s20 = ssub.s32 256, 256
      %21 = vsyncadd [#allocation3], %s20
      %s22 = sshll.u32 [#allocation2], 4
      %s23 = int_to_ptr.vmem [resolvable:$true] %s22
      %28 = dma.hbm_to_vmem [thread:$0]  %s0, 256, %s23, [#allocation3], 128, 128, 8
    $region5: #{tpu_custom_call.1} parent=1 // pred_fallthru
      _
    // Predicated region
    $region6: #{tpu_custom_call.1} parent=1 // pred_check
      _
    $region7: #{tpu_custom_call.1} parent=1 // pred_check_branch
      %30 = sbr.rel (0) target = $region9
    $region8: #{tpu_custom_call.1} parent=1 // pred_region
      %s32 = ssub.s32 32, 32
      %33 = vsyncadd [#allocation6], %s32
      %s35 = sshll.u32 [#allocation5], 4
      %s36 = int_to_ptr.vmem [resolvable:$true] %s35
      %38 = dma.hbm_to_vmem [thread:$0]  %s1, 32, %s36, [#allocation6]
    $region9: #{tpu_custom_call.1} parent=1 // pred_fallthru
      _
    // Predicated region
    $region10: #{tpu_custom_call.1} parent=1 // pred_check
      _
    $region11: #{tpu_custom_call.1} parent=1 // pred_check_branch
      %40 = sbr.rel (0) target = $region13
    $region12: #{tpu_custom_call.1} parent=1 // pred_region
      %s42 = ssub.s32 512, 512
      %43 = vsyncadd [#allocation6], %s42
      %s44 = sshll.u32 [#allocation7], 4
      %s45 = int_to_ptr.vmem [resolvable:$true] %s44
      %50 = dma.hbm_to_vmem [thread:$0]  %s2, 512, %s45, [#allocation6], 128, 128, 8
    $region13: #{tpu_custom_call.1} parent=1 // pred_fallthru
      _
    // Predicated region
    $region14: #{tpu_custom_call.1} parent=1 // pred_check
      _
    $region15: #{tpu_custom_call.1} parent=1 // pred_check_branch
      %52 = sbr.rel (0) target = $region17
    $region16: #{tpu_custom_call.1} parent=1 // pred_region
      %s54 = ssub.s32 512, 512
      %55 = vsyncadd [#allocation9], %s54
      %s56 = sshll.u32 [#allocation8], 4
      %s57 = int_to_ptr.vmem [resolvable:$true] %s56
      %62 = dma.hbm_to_vmem [thread:$0]  %s3, 512, %s57, [#allocation9], 128, 128, 8
    $region17: #{tpu_custom_call.1} parent=1 // pred_fallthru
      _
    // Predicated region
    $region18: #{tpu_custom_call.1} parent=1 // pred_check
      _
    $region19: #{tpu_custom_call.1} parent=1 // pred_check_branch
      %64 = sbr.rel (0) target = $region21
    $region20: #{tpu_custom_call.1} parent=1 // pred_region
      _
    $region21: #{tpu_custom_call.1} parent=1 // pred_fallthru
      _
    // Predicated region
    $region22: #{tpu_custom_call.1} parent=1 // pred_check
      _
    $region23: #{tpu_custom_call.1} parent=1 // pred_check_branch
      %66 = sbr.rel (0) target = $region25
    $region24: #{tpu_custom_call.1} parent=1 // pred_region
      %67 = dma.done [#allocation3], 256
    $region25: #{tpu_custom_call.1} parent=1 // pred_fallthru
      _
    // Predicated region
    $region26: #{tpu_custom_call.1} parent=1 // pred_check
      _
    $region27: #{tpu_custom_call.1} parent=1 // pred_check_branch
      %69 = sbr.rel (0) target = $region29
    $region28: #{tpu_custom_call.1} parent=1 // pred_region
      %70 = dma.done [#allocation6], 32
    $region29: #{tpu_custom_call.1} parent=1 // pred_fallthru
      _
    // Predicated region
    $region30: #{tpu_custom_call.1} parent=1 // pred_check
      _
    $region31: #{tpu_custom_call.1} parent=1 // pred_check_branch
      %72 = sbr.rel (0) target = $region33
    $region32: #{tpu_custom_call.1} parent=1 // pred_region
      %73 = dma.done [#allocation6], 512
    $region33: #{tpu_custom_call.1} parent=1 // pred_fallthru
      _
    // Predicated region
    $region34: #{tpu_custom_call.1} parent=1 // pred_check
      _
    $region35: #{tpu_custom_call.1} parent=1 // pred_check_branch
      %75 = sbr.rel (0) target = $region37
    $region36: #{tpu_custom_call.1} parent=1 // pred_region
      %76 = dma.done [#allocation9], 512
    $region37: #{tpu_custom_call.1} parent=1 // pred_fallthru
      _
    %v77 = vld [vmem:[#allocation2] sm:$0xff]
    %v78 = vld [vmem:[#allocation2 + $0x8] sm:$0xff]
    %v79 = vld [vmem:[#allocation5] sm:$0x3]
    %v80 = vld [vmem:[%s4] sm:$0x1]
    %v81 = vld [vmem:[%s4 + $0x1] sm:$0x1]
    %v82 = vld [vmem:[#allocation7] sm:$0xff]
    %v83 = vld [vmem:[#allocation7 + $0x8] sm:$0xff]
    %v84 = vld [vmem:[#allocation7 + $0x10] sm:$0xff]
    %v85 = vld [vmem:[#allocation7 + $0x18] sm:$0xff]
    %vm86 = vcmask 261120
    %v88 = vsel %vm86, %v77, 0
    %v91 = vsel %vm86, %v78, 0
    %93 = vmatprep.subr.mxu0 0.0
    %94 = vmatpush1.msra.mxu0 0.0
    %95 = vmatprep.subr.mxu0 0.0
    %96 = vmatpush1.msra.mxu0 0.0
    %97 = vmatprep.subr.mxu0 0.0
    %98 = vmatpush1.msra.mxu0 0.0
    %99 = vmatprep.subr.mxu0 0.0
    %100 = vmatpush1.msra.mxu0 0.0
    %101 = vmatprep.subr.mxu0 0.0
    %102 = vmatpush1.msra.mxu0 0.0
    %103 = vmatprep.subr.mxu0 0.0
    %104 = vmatpush1.msra.mxu0 0.0
    %105 = vmatprep.subr.mxu0 0.0
    %106 = vmatpush1.msra.mxu0 0.0
    %107 = vmatprep.subr.mxu0 0.0
    %108 = vmatpush1.msra.mxu0 0.0
    %109 = vmatprep.subr.mxu0 0.0
    %110 = vmatpush1.msra.mxu0 0.0
    %111 = vmatprep.subr.mxu0 0.0
    %112 = vmatpush1.msra.mxu0 0.0
    %113 = vmatprep.subr.mxu0 0.0
    %114 = vmatpush1.msra.mxu0 0.0
    %115 = vmatprep.subr.mxu0 0.0
    %116 = vmatpush1.msra.mxu0 0.0
    %117 = vmatprep.subr.mxu0 0.0
    %118 = vmatpush1.msra.mxu0 %v85
    %119 = vmatprep.subr.mxu0 0.0
    %120 = vmatpush1.msra.mxu0 %v84
    %121 = vmatprep.subr.mxu0 0.0
    %122 = vmatpush1.msra.mxu0 %v83
    %123 = vmatprep.subr.mxu0 0.0
    %124 = vmatpush1.msra.mxu0 %v82
    %125 = vmatprep.subr.mxu0 0.0
    %126 = vmatpush2.msra.mxu0 0.0
    %127 = vmatprep.subr.mxu0 0.0
    %128 = vmatpush2.msra.mxu0 0.0
    %129 = vmatprep.subr.mxu0 0.0
    %130 = vmatpush2.msra.mxu0 0.0
    %131 = vmatprep.subr.mxu0 0.0
    %132 = vmatpush2.msra.mxu0 0.0
    %133 = vmatprep.subr.mxu0 0.0
    %134 = vmatpush2.msra.mxu0 0.0
    %135 = vmatprep.subr.mxu0 0.0
    %136 = vmatpush2.msra.mxu0 0.0
    %137 = vmatprep.subr.mxu0 0.0
    %138 = vmatpush2.msra.mxu0 0.0
    %139 = vmatprep.subr.mxu0 0.0
    %140 = vmatpush2.msra.mxu0 0.0
    %141 = vmatprep.subr.mxu0 0.0
    %142 = vmatpush2.msra.mxu0 0.0
    %143 = vmatprep.subr.mxu0 0.0
    %144 = vmatpush2.msra.mxu0 0.0
    %145 = vmatprep.subr.mxu0 0.0
    %146 = vmatpush2.msra.mxu0 0.0
    %147 = vmatprep.subr.mxu0 0.0
    %148 = vmatpush2.msra.mxu0 0.0
    %149 = vmatprep.subr.mxu0 0.0
    %150 = vmatpush2.msra.mxu0 0.0
    %151 = vmatprep.subr.mxu0 0.0
    %152 = vmatpush2.msra.mxu0 0.0
    %153 = vmatprep.subr.mxu0 0.0
    %154 = vmatpush2.msra.mxu0 0.0
    %155 = vmatprep.subr.mxu0 0.0
    %156 = vmatpush2.msra.mxu0 0.0
    %157 = vmatprep.mubr.f32.mxu0 0.0
    %158 = vmatmul.mubr.f32.gmra.mxu0 %v88
    %v159 = vpop.f32.mrf.mxu0
    %v160 = vadd.f32 0.0, %v159
    %v161 = vpop.f32.mrf.mxu0
    %162 = vmatprep.mubr.f32.mxu0 0.0
    %163 = vmatmul.mubr.f32.gmra.mxu0 %v91
    %v164 = vpop.f32.mrf.mxu0
    %v165 = vadd.f32 0.0, %v164
    %v166 = vpop.f32.mrf.mxu0
    %167 = vdwg.mxu0
    %v168 = vld [vmem:[#allocation8] sm:$0xff]
    %v169 = vld [vmem:[#allocation8 + $0x8] sm:$0xff]
    %v170 = vld [vmem:[#allocation8 + $0x10] sm:$0xff]
    %v171 = vld [vmem:[#allocation8 + $0x18] sm:$0xff]
    %v172 = vlaneseq
    %v173 = vshrl.u32 %v172, 7
    %v174 = vsub.s32 0, %v173
    %v175 = vrot.slane %v80, %v174
    %v177 = vsel %vm86, %v79, 0
    %179 = vmatprep.subr.mxu0 0.0
    %180 = vmatpush1.msra.mxu0 0.0
    %181 = vmatprep.subr.mxu0 0.0
    %182 = vmatpush1.msra.mxu0 0.0
    %183 = vmatprep.subr.mxu0 0.0
    %184 = vmatpush1.msra.mxu0 0.0
    %185 = vmatprep.subr.mxu0 0.0
    %186 = vmatpush1.msra.mxu0 0.0
    %187 = vmatprep.subr.mxu0 0.0
    %188 = vmatpush1.msra.mxu0 0.0
    %189 = vmatprep.subr.mxu0 0.0
    %190 = vmatpush1.msra.mxu0 0.0
    %191 = vmatprep.subr.mxu0 0.0
    %192 = vmatpush1.msra.mxu0 0.0
    %193 = vmatprep.subr.mxu0 0.0
    %194 = vmatpush1.msra.mxu0 0.0
    %195 = vmatprep.subr.mxu0 0.0
    %196 = vmatpush1.msra.mxu0 0.0
    %197 = vmatprep.subr.mxu0 0.0
    %198 = vmatpush1.msra.mxu0 0.0
    %199 = vmatprep.subr.mxu0 0.0
    %200 = vmatpush1.msra.mxu0 0.0
    %201 = vmatprep.subr.mxu0 0.0
    %202 = vmatpush1.msra.mxu0 0.0
    %203 = vmatprep.subr.mxu0 0.0
    %204 = vmatpush1.msra.mxu0 %v171
    %205 = vmatprep.subr.mxu0 0.0
    %206 = vmatpush1.msra.mxu0 %v170
    %207 = vmatprep.subr.mxu0 0.0
    %208 = vmatpush1.msra.mxu0 %v169
    %209 = vmatprep.subr.mxu0 0.0
    %210 = vmatpush1.msra.mxu0 %v168
    %211 = vmatprep.subr.mxu0 0.0
    %212 = vmatpush2.msra.mxu0 0.0
    %213 = vmatprep.subr.mxu0 0.0
    %214 = vmatpush2.msra.mxu0 0.0
    %215 = vmatprep.subr.mxu0 0.0
    %216 = vmatpush2.msra.mxu0 0.0
    %217 = vmatprep.subr.mxu0 0.0
    %218 = vmatpush2.msra.mxu0 0.0
    %219 = vmatprep.subr.mxu0 0.0
    %220 = vmatpush2.msra.mxu0 0.0
    %221 = vmatprep.subr.mxu0 0.0
    %222 = vmatpush2.msra.mxu0 0.0
    %223 = vmatprep.subr.mxu0 0.0
    %224 = vmatpush2.msra.mxu0 0.0
    %225 = vmatprep.subr.mxu0 0.0
    %226 = vmatpush2.msra.mxu0 0.0
    %227 = vmatprep.subr.mxu0 0.0
    %228 = vmatpush2.msra.mxu0 0.0
    %229 = vmatprep.subr.mxu0 0.0
    %230 = vmatpush2.msra.mxu0 0.0
    %231 = vmatprep.subr.mxu0 0.0
    %232 = vmatpush2.msra.mxu0 0.0
    %233 = vmatprep.subr.mxu0 0.0
    %234 = vmatpush2.msra.mxu0 0.0
    %235 = vmatprep.subr.mxu0 0.0
    %236 = vmatpush2.msra.mxu0 0.0
    %237 = vmatprep.subr.mxu0 0.0
    %238 = vmatpush2.msra.mxu0 0.0
    %239 = vmatprep.subr.mxu0 0.0
    %240 = vmatpush2.msra.mxu0 0.0
    %241 = vmatprep.subr.mxu0 0.0
    %242 = vmatpush2.msra.mxu0 0.0
    %243 = vmatprep.mubr.f32.mxu0 0.0
    %244 = vmatmul.mubr.f32.gmra.mxu0 %v177
    %v245 = vpop.f32.mrf.mxu0
    %v246 = vadd.f32 %v175, %v245
    %v247 = vpop.f32.mrf.mxu0
    %248 = vdwg.mxu0
    %v251 = vunpack.c.l.s4 1966171168
    %v252 = vunpack.c.0.s8 %v251
    %v253 = vlaneseq
    %v254 = vshrl.u32 %v253, 7
    %v255 = vsub.s32 %v252, %v254
    %v256 = vrot.slane %v246, %v255
    %v257 = vcombine.high %v256, %v256
    %v259 = vunpack.c.l.s4 1966171168
    %v260 = vunpack.c.0.s8 %v259
    %v261 = vlaneseq
    %v262 = vshrl.u32 %v261, 7
    %v263 = vsub.s32 %v260, %v262
    %v264 = vrot.slane %v256, %v263
    %v266 = vunpack.c.l.s4 1966171168
    %v267 = vunpack.c.0.s8 %v266
    %v268 = vlaneseq
    %v269 = vshrl.u32 %v268, 7
    %v270 = vsub.s32 %v267, %v269
    %v271 = vrot.slane %v257, %v270
    %v272 = vlaneseq
    %v273 = vshrl.u32 %v272, 7
    %v274 = vsub.s32 0, %v273
    %v275 = vrot.slane %v264, %v274
    %v276 = vlaneseq
    %v277 = vshrl.u32 %v276, 7
    %v278 = vsub.s32 0, %v277
    %v279 = vrot.slane %v271, %v278
    %v282 = vadd.f32 %v160, %v275
    %v283 = vadd.f32 %v165, %v279
    %v284 = vmax.f32 %v282, 0.0
    %v285 = vmax.f32 %v283, 0.0
    %v286 = vlaneseq
    %v287 = vshrl.u32 %v286, 7
    %v288 = vsub.s32 0, %v287
    %v289 = vrot.slane %v81, %v288
    %v290 = vmul.f32 %v284, %v289
    %v291 = vmul.f32 %v285, %v289
    %v292 = vsel %vm86, %v290, 0.0
    %293 = vadd.xlane.f32.xlu0 %v292
    %v294 = vpop.xlane.xlu0 %293
    %v295 = vsel %vm86, %v291, 0.0
    %296 = vadd.xlane.f32.xlu0 %v295
    %v297 = vpop.xlane.xlu0 %296
    %v300 = vlaneseq
    %v301 = vand.u32 %v300, 127
    %v302 = vlaneseq
    %v303 = vshrl.u32 %v302, 7
    %v304 = vsub.s32 %v301, %v303
    %v305 = vrot.slane %v294, %v304
    %v306 = vlaneseq
    %v307 = vshrl.u32 %v306, 7
    %v308 = vsub.s32 %v301, %v307
    %v309 = vrot.slane %v297, %v308
    %vm310 = vcmask 1041409
    %v311 = vsel %vm310, %v309, %v305
    %vm313 = vcmask 58368
    %v314 = vsel %vm313, %v311, -inf
    %315 = vmax.xlane.f32.xlu0 %v314
    %v316 = vpop.xlane.xlu0 %315
    %v318 = vlaneseq
    %v319 = vshrl.u32 %v318, 7
    %v320 = vsub.s32 0, %v319
    %v321 = vrot.slane %v316, %v320
    %v322 = vlaneseq
    %v323 = vshrl.u32 %v322, 7
    %v324 = vsub.s32 1, %v323
    %v325 = vrot.slane %v316, %v324
    %v328 = vsub.f32 %v294, %v321
    %v329 = vsub.f32 %v297, %v325
    %v330 = vmul.f32 %v328, 1.442695
    %v331 = vpow.pop %v330
    %v332 = vmul.f32 %v329, 1.442695
    %v333 = vpow.pop %v332
    %336 = vset.pattern.permute.xlu0 0
    %337 = vperm.xlu0 %336, %v331
    %v338 = vpop.permute.xlu0 %337
    %339 = vset.pattern.permute.xlu0 0
    %340 = vperm.xlu0 %339, %v333
    %v341 = vpop.permute.xlu0 %340
    %v342 = vlaneseq
    %v343 = vshrl.u32 %v342, 7
    %v344 = vsub.s32 %v301, %v343
    %v345 = vrot.slane %v338, %v344
    %v346 = vlaneseq
    %v347 = vshrl.u32 %v346, 7
    %v348 = vsub.s32 %v301, %v347
    %v349 = vrot.slane %v341, %v348
    %v350 = vsel %vm310, %v349, %v345
    %v352 = vsel %vm313, %v350, 0.0
    %353 = vadd.xlane.f32.xlu0 %v352
    %v354 = vpop.xlane.xlu0 %353
    %v355 = vrcp.pop %v354
    %v357 = vlaneseq
    %v358 = vshrl.u32 %v357, 7
    %v359 = vsub.s32 0, %v358
    %v360 = vrot.slane %v355, %v359
    %v361 = vlaneseq
    %v362 = vshrl.u32 %v361, 7
    %v363 = vsub.s32 1, %v362
    %v364 = vrot.slane %v355, %v363
    %v367 = vmul.f32 %v331, %v360
    %v368 = vmul.f32 %v333, %v364
    %370 = vset.pattern.permute.xlu0 0
    %371 = vperm.xlu0 %370, %v367
    %v372 = vpop.permute.xlu0 %371
    %375 = vset.pattern.permute.xlu0 0
    %376 = vperm.xlu0 %375, %v368
    %v377 = vpop.permute.xlu0 %376
    %v379 = vmul.f32 %v77, %v372
    %v380 = vmul.f32 %v78, %v377
    %v381 = vsel %vm86, %v379, 0.0
    %v382 = vrot.slane %v381, 4
    %v383 = vadd.f32 %v381, %v382
    %v384 = vrot.slane %v383, 2
    %v385 = vadd.f32 %v383, %v384
    %v386 = vrot.slane %v385, 1
    %v387 = vadd.f32 %v385, %v386
    %v388 = vsel %vm86, %v380, 0.0
    %v389 = vrot.slane %v388, 4
    %v390 = vadd.f32 %v388, %v389
    %v391 = vrot.slane %v390, 2
    %v392 = vadd.f32 %v390, %v391
    %v393 = vrot.slane %v392, 1
    %v394 = vadd.f32 %v392, %v393
    %v397 = vsel %vm310, %v394, %v387
    %vm399 = vcmask 254976
    %400 = vst.msk [vmem:[#allocation10] sm:$0x3] %vm399, %v397
    %v401 = vlaneseq
    %v402 = vshrl.u32 %v401, 7
    %v403 = vsub.s32 %v301, %v402
    %v404 = vrot.slane %v372, %v403
    %v405 = vlaneseq
    %v406 = vshrl.u32 %v405, 7
    %v407 = vsub.s32 %v301, %v406
    %v408 = vrot.slane %v377, %v407
    %v409 = vsel %vm310, %v408, %v404
    %411 = vst.msk [vmem:[#allocation11] sm:$0x3] %vm313, %v409
    // Predicated region
    $region38: #{tpu_custom_call.1} parent=1 // pred_check
      _
    $region39: #{tpu_custom_call.1} parent=1 // pred_check_branch
      %413 = sbr.rel (0) target = $region41
    $region40: #{tpu_custom_call.1} parent=1 // pred_region
      %s415 = ssub.s32 32, 32
      %416 = vsyncadd [#allocation4], %s415
      %s418 = sshll.u32 [#allocation10], 4
      %s419 = int_to_ptr.vmem [resolvable:$true] %s418
      %421 = dma.vmem_to_hbm [thread:$0]  %s419, 32, %s5, [#allocation4]
    $region41: #{tpu_custom_call.1} parent=1 // pred_fallthru
      _
    // Predicated region
    $region42: #{tpu_custom_call.1} parent=1 // pred_check
      _
    $region43: #{tpu_custom_call.1} parent=1 // pred_check_branch
      %423 = sbr.rel (0) target = $region45
    $region44: #{tpu_custom_call.1} parent=1 // pred_region
      %s425 = ssub.s32 32, 32
      %426 = vsyncadd [#allocation12], %s425
      %s428 = sshll.u32 [#allocation11], 4
      %s429 = int_to_ptr.vmem [resolvable:$true] %s428
      %431 = dma.vmem_to_hbm [thread:$0]  %s429, 32, %s6, [#allocation12]
    $region45: #{tpu_custom_call.1} parent=1 // pred_fallthru
      _
    // Predicated region
    $region46: #{tpu_custom_call.1} parent=1 // pred_check
      _
    $region47: #{tpu_custom_call.1} parent=1 // pred_check_branch
      %433 = sbr.rel (0) target = $region49
    $region48: #{tpu_custom_call.1} parent=1 // pred_region
      %434 = dma.done [#allocation4], 32
    $region49: #{tpu_custom_call.1} parent=1 // pred_fallthru
      _
    // Predicated region
    $region50: #{tpu_custom_call.1} parent=1 // pred_check
      _
    $region51: #{tpu_custom_call.1} parent=1 // pred_check_branch
      %436 = sbr.rel (0) target = $region53
    $region52: #{tpu_custom_call.1} parent=1 // pred_region
      %437 = dma.done [#allocation12], 32
    $region53: #{tpu_custom_call.1} parent=1 // pred_fallthru
      _
    %438 = vsyncpa [#allocation3], 1
    %439 = vsyncpa [#allocation6], 1
    %440 = vsyncpa [#allocation9], 1
    %441 = vsyncpa [#allocation4], 1
    %442 = vsyncpa [#allocation12], 1

// kernel: tpu_custom_call.1
$region0: #{tpu_custom_call.1}
  #allocation0 [shape = 'u32[]', space=smem, size = 0x4, offset = 0x4, fixed_abs, tag = 'smem constant byte address 0x4 - core index']
  #allocation1 [shape = 'u32[144,128]{1,0:T(1,128)}', space=vmem, size = 0x12000, scoped, tag = 'internal scratch']
  %s0 = inlined_call_operand.hbm [shape: f32[2,8,32], index: 0, kind: input, shape index: {}]
  %s1 = inlined_call_operand.hbm [shape: f32[2,32], index: 1, kind: input, shape index: {}]
  %s2 = inlined_call_operand.hbm [shape: f32[32,32], index: 2, kind: input, shape index: {}]
  %s3 = inlined_call_operand.hbm [shape: f32[32,32], index: 3, kind: input, shape index: {}]
  %s4 = inlined_call_operand.vmem [shape: f32[2,32], index: 4, kind: input, shape index: {}]
  %s5 = inlined_call_operand.hbm [shape: f32[2,32], index: 5, kind: output, shape index: {0}]
  %s6 = inlined_call_operand.hbm [shape: f32[2,8], index: 6, kind: output, shape index: {1}]
  %7 = xla_tuple %s5, %s6
  %s8 = sld [smem:[#allocation0]]
  $region54: #{tpu_custom_call.1} parent=0
    _
  %s10 = ssub.s32 1, %s8
  %s11 = scalar_select 0, %s10, %s8
  $region1: #{tpu_custom_call.1} parent=0
    #allocation2 [shape = 'u8[8192]{0}', space=vmem, size = 0x2000, scoped, tag = 'input window, operand 0, single buffered']
    #allocation3 [shape = 's32[1]{0}', space=sflag, size = 0x4, scoped, tag = 'scoped memory for tpu_custom_call.1']
    #allocation4 [shape = 's32[1]{0}', space=sflag, size = 0x4, scoped, tag = 'scoped memory for tpu_custom_call.1']
    #allocation5 [shape = 'u8[1024]{0}', space=vmem, size = 0x400, scoped, tag = 'input window, operand 1, single buffered']
    #allocation6 [shape = 's32[1]{0}', space=sflag, size = 0x4, scoped, tag = 'scoped memory for tpu_custom_call.1']
    #allocation7 [shape = 'u8[16384]{0}', space=vmem, size = 0x4000, scoped, tag = 'input window, operand 2, single buffered']
    #allocation8 [shape = 'u8[16384]{0}', space=vmem, size = 0x4000, scoped, tag = 'input window, operand 3, single buffered']
    #allocation9 [shape = 's32[1]{0}', space=sflag, size = 0x4, scoped, tag = 'scoped memory for tpu_custom_call.1']
    #allocation10 [shape = 'u8[1024]{0}', space=vmem, size = 0x400, scoped, tag = 'output window, operand 0, single buffered']
    #allocation11 [shape = 'u8[1024]{0}', space=vmem, size = 0x400, scoped, tag = 'output window, operand 1, single buffered']
    #allocation12 [shape = 's32[1]{0}', space=sflag, size = 0x4, scoped, tag = 'scoped memory for tpu_custom_call.1']
    %12 = vsyncpa [#allocation3], 0
    %13 = vsyncpa [#allocation6], 0
    %14 = vsyncpa [#allocation9], 0
    %15 = vsyncpa [#allocation4], 0
    %16 = vsyncpa [#allocation12], 0
    // Predicated region
    $region2: #{tpu_custom_call.1} parent=1 // pred_check
      _
    $region3: #{tpu_custom_call.1} parent=1 // pred_check_branch
      %18 = sbr.rel (0) target = $region5
    $region4: #{tpu_custom_call.1} parent=1 // pred_region
      %s20 = ssub.s32 256, 256
      %21 = vsyncadd [#allocation3], %s20
      %s22 = sshll.u32 [#allocation2], 4
      %s23 = int_to_ptr.vmem [resolvable:$true] %s22
      %28 = dma.hbm_to_vmem [thread:$0]  %s0, 256, %s23, [#allocation3], 128, 128, 8
    $region5: #{tpu_custom_call.1} parent=1 // pred_fallthru
      _
    // Predicated region
    $region6: #{tpu_custom_call.1} parent=1 // pred_check
      _
    $region7: #{tpu_custom_call.1} parent=1 // pred_check_branch
      %30 = sbr.rel (0) target = $region9
    $region8: #{tpu_custom_call.1} parent=1 // pred_region
      %s32 = ssub.s32 32, 32
      %33 = vsyncadd [#allocation6], %s32
      %s35 = sshll.u32 [#allocation5], 4
      %s36 = int_to_ptr.vmem [resolvable:$true] %s35
      %38 = dma.hbm_to_vmem [thread:$0]  %s1, 32, %s36, [#allocation6]
    $region9: #{tpu_custom_call.1} parent=1 // pred_fallthru
      _
    // Predicated region
    $region10: #{tpu_custom_call.1} parent=1 // pred_check
      _
    $region11: #{tpu_custom_call.1} parent=1 // pred_check_branch
      %40 = sbr.rel (0) target = $region13
    $region12: #{tpu_custom_call.1} parent=1 // pred_region
      %s42 = ssub.s32 512, 512
      %43 = vsyncadd [#allocation6], %s42
      %s44 = sshll.u32 [#allocation7], 4
      %s45 = int_to_ptr.vmem [resolvable:$true] %s44
      %50 = dma.hbm_to_vmem [thread:$0]  %s2, 512, %s45, [#allocation6], 128, 128, 8
    $region13: #{tpu_custom_call.1} parent=1 // pred_fallthru
      _
    // Predicated region
    $region14: #{tpu_custom_call.1} parent=1 // pred_check
      _
    $region15: #{tpu_custom_call.1} parent=1 // pred_check_branch
      %52 = sbr.rel (0) target = $region17
    $region16: #{tpu_custom_call.1} parent=1 // pred_region
      %s54 = ssub.s32 512, 512
      %55 = vsyncadd [#allocation9], %s54
      %s56 = sshll.u32 [#allocation8], 4
      %s57 = int_to_ptr.vmem [resolvable:$true] %s56
      %62 = dma.hbm_to_vmem [thread:$0]  %s3, 512, %s57, [#allocation9], 128, 128, 8
    $region17: #{tpu_custom_call.1} parent=1 // pred_fallthru
      _
    // Predicated region
    $region18: #{tpu_custom_call.1} parent=1 // pred_check
      _
    $region19: #{tpu_custom_call.1} parent=1 // pred_check_branch
      %64 = sbr.rel (0) target = $region21
    $region20: #{tpu_custom_call.1} parent=1 // pred_region
      _
    $region21: #{tpu_custom_call.1} parent=1 // pred_fallthru
      _
    // Predicated region
    $region22: #{tpu_custom_call.1} parent=1 // pred_check
      _
    $region23: #{tpu_custom_call.1} parent=1 // pred_check_branch
      %66 = sbr.rel (0) target = $region25
    $region24: #{tpu_custom_call.1} parent=1 // pred_region
      %67 = dma.done [#allocation3], 256
    $region25: #{tpu_custom_call.1} parent=1 // pred_fallthru
      _
    // Predicated region
    $region26: #{tpu_custom_call.1} parent=1 // pred_check
      _
    $region27: #{tpu_custom_call.1} parent=1 // pred_check_branch
      %69 = sbr.rel (0) target = $region29
    $region28: #{tpu_custom_call.1} parent=1 // pred_region
      %70 = dma.done [#allocation6], 32
    $region29: #{tpu_custom_call.1} parent=1 // pred_fallthru
      _
    // Predicated region
    $region30: #{tpu_custom_call.1} parent=1 // pred_check
      _
    $region31: #{tpu_custom_call.1} parent=1 // pred_check_branch
      %72 = sbr.rel (0) target = $region33
    $region32: #{tpu_custom_call.1} parent=1 // pred_region
      %73 = dma.done [#allocation6], 512
    $region33: #{tpu_custom_call.1} parent=1 // pred_fallthru
      _
    // Predicated region
    $region34: #{tpu_custom_call.1} parent=1 // pred_check
      _
    $region35: #{tpu_custom_call.1} parent=1 // pred_check_branch
      %75 = sbr.rel (0) target = $region37
    $region36: #{tpu_custom_call.1} parent=1 // pred_region
      %76 = dma.done [#allocation9], 512
    $region37: #{tpu_custom_call.1} parent=1 // pred_fallthru
      _
    %v77 = vld [vmem:[#allocation2] sm:$0xff]
    %v78 = vld [vmem:[#allocation2 + $0x8] sm:$0xff]
    %v79 = vld [vmem:[#allocation5] sm:$0x3]
    %v80 = vld [vmem:[%s4] sm:$0x1]
    %v81 = vld [vmem:[%s4 + $0x1] sm:$0x1]
    %v82 = vld [vmem:[#allocation7] sm:$0xff]
    %v83 = vld [vmem:[#allocation7 + $0x8] sm:$0xff]
    %v84 = vld [vmem:[#allocation7 + $0x10] sm:$0xff]
    %v85 = vld [vmem:[#allocation7 + $0x18] sm:$0xff]
    %vm86 = vcmask 261120
    %v88 = vsel %vm86, %v77, 0
    %v91 = vsel %vm86, %v78, 0
    %93 = vmatprep.subr.mxu0 0.0
    %94 = vmatpush1.msra.mxu0 0.0
    %95 = vmatprep.subr.mxu0 0.0
    %96 = vmatpush1.msra.mxu0 0.0
    %97 = vmatprep.subr.mxu0 0.0
    %98 = vmatpush1.msra.mxu0 0.0
    %99 = vmatprep.subr.mxu0 0.0
    %100 = vmatpush1.msra.mxu0 0.0
    %101 = vmatprep.subr.mxu0 0.0
    %102 = vmatpush1.msra.mxu0 0.0
    %103 = vmatprep.subr.mxu0 0.0
    %104 = vmatpush1.msra.mxu0 0.0
    %105 = vmatprep.subr.mxu0 0.0
    %106 = vmatpush1.msra.mxu0 0.0
    %107 = vmatprep.subr.mxu0 0.0
    %108 = vmatpush1.msra.mxu0 0.0
    %109 = vmatprep.subr.mxu0 0.0
    %110 = vmatpush1.msra.mxu0 0.0
    %111 = vmatprep.subr.mxu0 0.0
    %112 = vmatpush1.msra.mxu0 0.0
    %113 = vmatprep.subr.mxu0 0.0
    %114 = vmatpush1.msra.mxu0 0.0
    %115 = vmatprep.subr.mxu0 0.0
    %116 = vmatpush1.msra.mxu0 0.0
    %117 = vmatprep.subr.mxu0 0.0
    %118 = vmatpush1.msra.mxu0 %v85
    %119 = vmatprep.subr.mxu0 0.0
    %120 = vmatpush1.msra.mxu0 %v84
    %121 = vmatprep.subr.mxu0 0.0
    %122 = vmatpush1.msra.mxu0 %v83
    %123 = vmatprep.subr.mxu0 0.0
    %124 = vmatpush1.msra.mxu0 %v82
    %125 = vmatprep.subr.mxu0 0.0
    %126 = vmatpush2.msra.mxu0 0.0
    %127 = vmatprep.subr.mxu0 0.0
    %128 = vmatpush2.msra.mxu0 0.0
    %129 = vmatprep.subr.mxu0 0.0
    %130 = vmatpush2.msra.mxu0 0.0
    %131 = vmatprep.subr.mxu0 0.0
    %132 = vmatpush2.msra.mxu0 0.0
    %133 = vmatprep.subr.mxu0 0.0
    %134 = vmatpush2.msra.mxu0 0.0
    %135 = vmatprep.subr.mxu0 0.0
    %136 = vmatpush2.msra.mxu0 0.0
    %137 = vmatprep.subr.mxu0 0.0
    %138 = vmatpush2.msra.mxu0 0.0
    %139 = vmatprep.subr.mxu0 0.0
    %140 = vmatpush2.msra.mxu0 0.0
    %141 = vmatprep.subr.mxu0 0.0
    %142 = vmatpush2.msra.mxu0 0.0
    %143 = vmatprep.subr.mxu0 0.0
    %144 = vmatpush2.msra.mxu0 0.0
    %145 = vmatprep.subr.mxu0 0.0
    %146 = vmatpush2.msra.mxu0 0.0
    %147 = vmatprep.subr.mxu0 0.0
    %148 = vmatpush2.msra.mxu0 0.0
    %149 = vmatprep.subr.mxu0 0.0
    %150 = vmatpush2.msra.mxu0 0.0
    %151 = vmatprep.subr.mxu0 0.0
    %152 = vmatpush2.msra.mxu0 0.0
    %153 = vmatprep.subr.mxu0 0.0
    %154 = vmatpush2.msra.mxu0 0.0
    %155 = vmatprep.subr.mxu0 0.0
    %156 = vmatpush2.msra.mxu0 0.0
    %157 = vmatprep.mubr.f32.mxu0 0.0
    %158 = vmatmul.mubr.f32.gmra.mxu0 %v88
    %v159 = vpop.f32.mrf.mxu0
    %v160 = vadd.f32 0.0, %v159
    %v161 = vpop.f32.mrf.mxu0
    %162 = vmatprep.mubr.f32.mxu0 0.0
    %163 = vmatmul.mubr.f32.gmra.mxu0 %v91
    %v164 = vpop.f32.mrf.mxu0
    %v165 = vadd.f32 0.0, %v164
    %v166 = vpop.f32.mrf.mxu0
    %167 = vdwg.mxu0
    %v168 = vld [vmem:[#allocation8] sm:$0xff]
    %v169 = vld [vmem:[#allocation8 + $0x8] sm:$0xff]
    %v170 = vld [vmem:[#allocation8 + $0x10] sm:$0xff]
    %v171 = vld [vmem:[#allocation8 + $0x18] sm:$0xff]
    %v172 = vlaneseq
    %v173 = vshrl.u32 %v172, 7
    %v174 = vsub.s32 0, %v173
    %v175 = vrot.slane %v80, %v174
    %v177 = vsel %vm86, %v79, 0
    %179 = vmatprep.subr.mxu0 0.0
    %180 = vmatpush1.msra.mxu0 0.0
    %181 = vmatprep.subr.mxu0 0.0
    %182 = vmatpush1.msra.mxu0 0.0
    %183 = vmatprep.subr.mxu0 0.0
    %184 = vmatpush1.msra.mxu0 0.0
    %185 = vmatprep.subr.mxu0 0.0
    %186 = vmatpush1.msra.mxu0 0.0
    %187 = vmatprep.subr.mxu0 0.0
    %188 = vmatpush1.msra.mxu0 0.0
    %189 = vmatprep.subr.mxu0 0.0
    %190 = vmatpush1.msra.mxu0 0.0
    %191 = vmatprep.subr.mxu0 0.0
    %192 = vmatpush1.msra.mxu0 0.0
    %193 = vmatprep.subr.mxu0 0.0
    %194 = vmatpush1.msra.mxu0 0.0
    %195 = vmatprep.subr.mxu0 0.0
    %196 = vmatpush1.msra.mxu0 0.0
    %197 = vmatprep.subr.mxu0 0.0
    %198 = vmatpush1.msra.mxu0 0.0
    %199 = vmatprep.subr.mxu0 0.0
    %200 = vmatpush1.msra.mxu0 0.0
    %201 = vmatprep.subr.mxu0 0.0
    %202 = vmatpush1.msra.mxu0 0.0
    %203 = vmatprep.subr.mxu0 0.0
    %204 = vmatpush1.msra.mxu0 %v171
    %205 = vmatprep.subr.mxu0 0.0
    %206 = vmatpush1.msra.mxu0 %v170
    %207 = vmatprep.subr.mxu0 0.0
    %208 = vmatpush1.msra.mxu0 %v169
    %209 = vmatprep.subr.mxu0 0.0
    %210 = vmatpush1.msra.mxu0 %v168
    %211 = vmatprep.subr.mxu0 0.0
    %212 = vmatpush2.msra.mxu0 0.0
    %213 = vmatprep.subr.mxu0 0.0
    %214 = vmatpush2.msra.mxu0 0.0
    %215 = vmatprep.subr.mxu0 0.0
    %216 = vmatpush2.msra.mxu0 0.0
    %217 = vmatprep.subr.mxu0 0.0
    %218 = vmatpush2.msra.mxu0 0.0
    %219 = vmatprep.subr.mxu0 0.0
    %220 = vmatpush2.msra.mxu0 0.0
    %221 = vmatprep.subr.mxu0 0.0
    %222 = vmatpush2.msra.mxu0 0.0
    %223 = vmatprep.subr.mxu0 0.0
    %224 = vmatpush2.msra.mxu0 0.0
    %225 = vmatprep.subr.mxu0 0.0
    %226 = vmatpush2.msra.mxu0 0.0
    %227 = vmatprep.subr.mxu0 0.0
    %228 = vmatpush2.msra.mxu0 0.0
    %229 = vmatprep.subr.mxu0 0.0
    %230 = vmatpush2.msra.mxu0 0.0
    %231 = vmatprep.subr.mxu0 0.0
    %232 = vmatpush2.msra.mxu0 0.0
    %233 = vmatprep.subr.mxu0 0.0
    %234 = vmatpush2.msra.mxu0 0.0
    %235 = vmatprep.subr.mxu0 0.0
    %236 = vmatpush2.msra.mxu0 0.0
    %237 = vmatprep.subr.mxu0 0.0
    %238 = vmatpush2.msra.mxu0 0.0
    %239 = vmatprep.subr.mxu0 0.0
    %240 = vmatpush2.msra.mxu0 0.0
    %241 = vmatprep.subr.mxu0 0.0
    %242 = vmatpush2.msra.mxu0 0.0
    %243 = vmatprep.mubr.f32.mxu0 0.0
    %244 = vmatmul.mubr.f32.gmra.mxu0 %v177
    %v245 = vpop.f32.mrf.mxu0
    %v246 = vadd.f32 %v175, %v245
    %v247 = vpop.f32.mrf.mxu0
    %248 = vdwg.mxu0
    %v251 = vunpack.c.l.s4 1966171168
    %v252 = vunpack.c.0.s8 %v251
    %v253 = vlaneseq
    %v254 = vshrl.u32 %v253, 7
    %v255 = vsub.s32 %v252, %v254
    %v256 = vrot.slane %v246, %v255
    %v257 = vcombine.high %v256, %v256
    %v259 = vunpack.c.l.s4 1966171168
    %v260 = vunpack.c.0.s8 %v259
    %v261 = vlaneseq
    %v262 = vshrl.u32 %v261, 7
    %v263 = vsub.s32 %v260, %v262
    %v264 = vrot.slane %v256, %v263
    %v266 = vunpack.c.l.s4 1966171168
    %v267 = vunpack.c.0.s8 %v266
    %v268 = vlaneseq
    %v269 = vshrl.u32 %v268, 7
    %v270 = vsub.s32 %v267, %v269
    %v271 = vrot.slane %v257, %v270
    %v272 = vlaneseq
    %v273 = vshrl.u32 %v272, 7
    %v274 = vsub.s32 0, %v273
    %v275 = vrot.slane %v264, %v274
    %v276 = vlaneseq
    %v277 = vshrl.u32 %v276, 7
    %v278 = vsub.s32 0, %v277
    %v279 = vrot.slane %v271, %v278
    %v282 = vadd.f32 %v160, %v275
    %v283 = vadd.f32 %v165, %v279
    %v284 = vmax.f32 %v282, 0.0
    %v285 = vmax.f32 %v283, 0.0
    %v286 = vlaneseq
    %v287 = vshrl.u32 %v286, 7
    %v288 = vsub.s32 0, %v287
    %v289 = vrot.slane %v81, %v288
    %v290 = vmul.f32 %v284, %v289
    %v291 = vmul.f32 %v285, %v289
    %v292 = vsel %vm86, %v290, 0.0
    %293 = vadd.xlane.f32.xlu0 %v292
    %v294 = vpop.xlane.xlu0 %293
    %v295 = vsel %vm86, %v291, 0.0
    %296 = vadd.xlane.f32.xlu0 %v295
    %v297 = vpop.xlane.xlu0 %296
    %v300 = vlaneseq
    %v301 = vand.u32 %v300, 127
    %v302 = vlaneseq
    %v303 = vshrl.u32 %v302, 7
    %v304 = vsub.s32 %v301, %v303
    %v305 = vrot.slane %v294, %v304
    %v306 = vlaneseq
    %v307 = vshrl.u32 %v306, 7
    %v308 = vsub.s32 %v301, %v307
    %v309 = vrot.slane %v297, %v308
    %vm310 = vcmask 1041409
    %v311 = vsel %vm310, %v309, %v305
    %vm313 = vcmask 58368
    %v314 = vsel %vm313, %v311, -inf
    %315 = vmax.xlane.f32.xlu0 %v314
    %v316 = vpop.xlane.xlu0 %315
    %v318 = vlaneseq
    %v319 = vshrl.u32 %v318, 7
    %v320 = vsub.s32 0, %v319
    %v321 = vrot.slane %v316, %v320
    %v322 = vlaneseq
    %v323 = vshrl.u32 %v322, 7
    %v324 = vsub.s32 1, %v323
    %v325 = vrot.slane %v316, %v324
    %v328 = vsub.f32 %v294, %v321
    %v329 = vsub.f32 %v297, %v325
    %v330 = vmul.f32 %v328, 1.442695
    %v331 = vpow.pop %v330
    %v332 = vmul.f32 %v329, 1.442695
    %v333 = vpow.pop %v332
    %336 = vset.pattern.permute.xlu0 0
    %337 = vperm.xlu0 %336, %v331
    %v338 = vpop.permute.xlu0 %337
    %339 = vset.pattern.permute.xlu0 0
    %340 = vperm.xlu0 %339, %v333
    %v341 = vpop.permute.xlu0 %340
    %v342 = vlaneseq
    %v343 = vshrl.u32 %v342, 7
    %v344 = vsub.s32 %v301, %v343
    %v345 = vrot.slane %v338, %v344
    %v346 = vlaneseq
    %v347 = vshrl.u32 %v346, 7
    %v348 = vsub.s32 %v301, %v347
    %v349 = vrot.slane %v341, %v348
    %v350 = vsel %vm310, %v349, %v345
    %v352 = vsel %vm313, %v350, 0.0
    %353 = vadd.xlane.f32.xlu0 %v352
    %v354 = vpop.xlane.xlu0 %353
    %v355 = vrcp.pop %v354
    %v357 = vlaneseq
    %v358 = vshrl.u32 %v357, 7
    %v359 = vsub.s32 0, %v358
    %v360 = vrot.slane %v355, %v359
    %v361 = vlaneseq
    %v362 = vshrl.u32 %v361, 7
    %v363 = vsub.s32 1, %v362
    %v364 = vrot.slane %v355, %v363
    %v367 = vmul.f32 %v331, %v360
    %v368 = vmul.f32 %v333, %v364
    %370 = vset.pattern.permute.xlu0 0
    %371 = vperm.xlu0 %370, %v367
    %v372 = vpop.permute.xlu0 %371
    %375 = vset.pattern.permute.xlu0 0
    %376 = vperm.xlu0 %375, %v368
    %v377 = vpop.permute.xlu0 %376
    %v379 = vmul.f32 %v77, %v372
    %v380 = vmul.f32 %v78, %v377
    %v381 = vsel %vm86, %v379, 0.0
    %v382 = vrot.slane %v381, 4
    %v383 = vadd.f32 %v381, %v382
    %v384 = vrot.slane %v383, 2
    %v385 = vadd.f32 %v383, %v384
    %v386 = vrot.slane %v385, 1
    %v387 = vadd.f32 %v385, %v386
    %v388 = vsel %vm86, %v380, 0.0
    %v389 = vrot.slane %v388, 4
    %v390 = vadd.f32 %v388, %v389
    %v391 = vrot.slane %v390, 2
    %v392 = vadd.f32 %v390, %v391
    %v393 = vrot.slane %v392, 1
    %v394 = vadd.f32 %v392, %v393
    %v397 = vsel %vm310, %v394, %v387
    %vm399 = vcmask 254976
    %400 = vst.msk [vmem:[#allocation10] sm:$0x3] %vm399, %v397
    %v401 = vlaneseq
    %v402 = vshrl.u32 %v401, 7
    %v403 = vsub.s32 %v301, %v402
    %v404 = vrot.slane %v372, %v403
    %v405 = vlaneseq
    %v406 = vshrl.u32 %v405, 7
    %v407 = vsub.s32 %v301, %v406
    %v408 = vrot.slane %v377, %v407
    %v409 = vsel %vm310, %v408, %v404
    %411 = vst.msk [vmem:[#allocation11] sm:$0x3] %vm313, %v409
    // Predicated region
    $region38: #{tpu_custom_call.1} parent=1 // pred_check
      _
    $region39: #{tpu_custom_call.1} parent=1 // pred_check_branch
      %413 = sbr.rel (0) target = $region41
    $region40: #{tpu_custom_call.1} parent=1 // pred_region
      %s415 = ssub.s32 32, 32
      %416 = vsyncadd [#allocation4], %s415
      %s418 = sshll.u32 [#allocation10], 4
      %s419 = int_to_ptr.vmem [resolvable:$true] %s418
      %421 = dma.vmem_to_hbm [thread:$0]  %s419, 32, %s5, [#allocation4]
    $region41: #{tpu_custom_call.1} parent=1 // pred_fallthru
      _
    // Predicated region
    $region42: #{tpu_custom_call.1} parent=1 // pred_check
      _
    $region43: #{tpu_custom_call.1} parent=1 // pred_check_branch
      %423 = sbr.rel (0) target = $region45
    $region44: #{tpu_custom_call.1} parent=1 // pred_region
      %s425 = ssub.s32 32, 32
      %426 = vsyncadd [#allocation12], %s425
      %s428 = sshll.u32 [#allocation11], 4
      %s429 = int_to_ptr.vmem [resolvable:$true] %s428
      %431 = dma.vmem_to_hbm [thread:$0]  %s429, 32, %s6, [#allocation12]
    $region45: #{tpu_custom_call.1} parent=1 // pred_fallthru
      _
    // Predicated region
    $region46: #{tpu_custom_call.1} parent=1 // pred_check
      _
    $region47: #{tpu_custom_call.1} parent=1 // pred_check_branch
      %433 = sbr.rel (0) target = $region49
    $region48: #{tpu_custom_call.1} parent=1 // pred_region
      %434 = dma.done [#allocation4], 32
    $region49: #{tpu_custom_call.1} parent=1 // pred_fallthru
      _
    // Predicated region
    $region50: #{tpu_custom_call.1} parent=1 // pred_check
      _
    $region51: #{tpu_custom_call.1} parent=1 // pred_check_branch
      %436 = sbr.rel (0) target = $region53
    $region52: #{tpu_custom_call.1} parent=1 // pred_region
      %437 = dma.done [#allocation12], 32
    $region53: #{tpu_custom_call.1} parent=1 // pred_fallthru
      _
    %438 = vsyncpa [#allocation3], 1
    %439 = vsyncpa [#allocation6], 1
    %440 = vsyncpa [#allocation9], 1
    %441 = vsyncpa [#allocation4], 1
    %442 = vsyncpa [#allocation12], 1

</llo_original>
